<compile_context>
chip_gen: v5e
topology: v5e:2x2
jax: 0.10.0
libtpu: 0.0.40
codegen_flags: <defaults>
</compile_context>

<pallas_src>
from functools import partial

import jax
import jax.numpy as jnp
from jax.experimental import pallas as pl
from jax.experimental.pallas import tpu as pltpu


def _round_up(a, b):
    return (a + b - 1) // b * b


# ----------------------------------------------------------------------------
# Pallas kernel: whole SS_TCN forward for one batch element per grid step.
# ----------------------------------------------------------------------------
def ss_tcn_kernel(dilations, seq_len,
                  x_ref, mask_ref,
                  w_in_ref, b_in_ref,
                  wd_ref, bd_ref, w1_ref, b1_ref,
                  wo_ref, bo_ref,
                  o_ref):
    nf = w_in_ref.shape[0]              # num_f_maps
    tp = x_ref.shape[-1]                # lane-padded time length
    bf16 = jnp.bfloat16

    # Lane-index map, built once and reused by every layer's tap edge masks.
    col = jax.lax.broadcasted_iota(jnp.int32, (nf, tp), 1)

    # conv_1x1 input projection: (F, D) @ (D, Tp) on the MXU, f32 accumulation.
    # x is already bf16 (cast in the wrapper); weights are bf16.
    h = jnp.dot(w_in_ref[...], x_ref[0],
                preferred_element_type=jnp.float32) + b_in_ref[...]

    # Dilated residual layers (static unroll; `dilations` is a Python tuple).
    # TODO(synk): for large L, make the layer index an 'arbitrary' grid axis
    # with per-layer weight BlockSpecs instead of a full Python unroll.
    for i, d in enumerate(dilations):
        # Shifted taps stay vreg-resident: XLU rolls + an edge mask replace the
        # zero-padded VMEM scratch round-trip of the previous version.
        #   left[t]  = h[t - d]   (zero for t < d         -> Conv1d zero padding)
        #   right[t] = h[t + d]   (zero for t + d >= T    -> Conv1d zero padding,
        #                          also kills wrap-around / lane-pad garbage)
        left = jnp.where(col >= d, pltpu.roll(h, shift=d, axis=1), 0.0)
        right = jnp.where(col < seq_len - d,
                          pltpu.roll(h, shift=tp - d, axis=1), 0.0)

        # conv_dilated: three (F, F) @ (F, Tp) bf16 MXU matmuls, f32 accum.
        # TODO(synk): measure vs. the fused (F, 3F) matmul and bf16-input rolls
        # per TPU generation (MXU has slack at F ~ 64, so split taps should win
        # on the vst/VPU-bound path, especially on v5e).
        y = (jnp.dot(wd_ref[3 * i + 0], left.astype(bf16),
                     preferred_element_type=jnp.float32)
             + jnp.dot(wd_ref[3 * i + 1], h.astype(bf16),
                       preferred_element_type=jnp.float32)
             + jnp.dot(wd_ref[3 * i + 2], right.astype(bf16),
                       preferred_element_type=jnp.float32)
             + bd_ref[i])
        y = jnp.maximum(y, 0.0)                                      # ReLU
        # layer conv_1x1.
        y = jnp.dot(w1_ref[i], y.astype(bf16),
                    preferred_element_type=jnp.float32) + b1_ref[i]
        # nn.Dropout() -> identity (eval-mode forward).
        h = h + y                                                    # residual

    # conv_out, then mask with mask[:, 0:1, :] (pre-sliced in the wrapper).
    m = mask_ref[0]                                                  # (1, Tp) f32
    out = (jnp.dot(wo_ref[...], h.astype(bf16),
                   preferred_element_type=jnp.float32) + bo_ref[...]) * m
    o_ref[0] = out.astype(o_ref.dtype)


# ----------------------------------------------------------------------------
# Wrapper
# ----------------------------------------------------------------------------
def ss_tcn_forward(x, mask, params, dilations):
    N, D, T = x.shape
    nf = params["w_in"].shape[0]
    L = len(dilations)
    C = params["wo"].shape[0]
    bf16 = jnp.bfloat16

    tp = _round_up(T, 128)                       # lane-dense time axis

    # Largest block is x -> DMA it in bf16. Only row 0 of the mask is read.
    x_p = jnp.pad(x, ((0, 0), (0, 0), (0, tp - T))).astype(bf16)
    mask_p = jnp.pad(mask[:, 0:1, :], ((0, 0), (0, 0), (0, tp - T)))

    # (L, 3, F, F) -> (3L, F, F): per-layer, per-tap weights indexed in-kernel.
    wd_flat = params["wd"].reshape(L * 3, nf, nf)

    kernel = partial(ss_tcn_kernel, tuple(dilations), T)

    # Explicit scoped-VMEM budget from the actual block / weight sizes
    # (x double-buffered in bf16 is the dominant term for real MS-TCN sizes).
    blk_bytes = 2 * (D * tp * 2 + 1 * tp * 4 + C * tp * 4)       # x, mask, out
    w_bytes = 2 * ((nf * D + 3 * L * nf * nf + L * nf * nf + C * nf) * 2
                   + (nf + 2 * L * nf + C) * 4)                  # weights+biases
    live_bytes = 16 * nf * tp * 4                                # h/taps/y + spill
    vmem_limit = int(min(max(blk_bytes + w_bytes + live_bytes + (2 << 20),
                             32 << 20), 56 << 20))               # <= v7x physical

    # TODO(synk): for production MS-TCN (D=2048, T in the thousands) hoist the
    # (F, D) @ (D, Tp) input projection out of this kernel (plain XLA matmul or
    # a K/T-tiled pallas_call) so kernel residency scales with F, and tile the
    # time axis with a halo equal to the *cumulative* receptive-field half-width
    # (sum of remaining dilations), which also gives a second parallel grid axis
    # for v7x's two TensorCores when N == 1.
    out_p = pl.pallas_call(
        kernel,
        out_shape=jax.ShapeDtypeStruct((N, C, tp), x.dtype),
        grid_spec=pltpu.PrefetchScalarGridSpec(
            num_scalar_prefetch=0,
            grid=(N,),
            in_specs=[
                pl.BlockSpec((1, D, tp), lambda n: (n, 0, 0)),        # x (bf16)
                pl.BlockSpec((1, 1, tp), lambda n: (n, 0, 0)),        # mask row0
                pl.BlockSpec((nf, D), lambda n: (0, 0)),              # w_in
                pl.BlockSpec((nf, 1), lambda n: (0, 0)),              # b_in
                pl.BlockSpec((3 * L, nf, nf), lambda n: (0, 0, 0)),   # wd taps
                pl.BlockSpec((L, nf, 1), lambda n: (0, 0, 0)),        # bd
                pl.BlockSpec((L, nf, nf), lambda n: (0, 0, 0)),       # w1
                pl.BlockSpec((L, nf, 1), lambda n: (0, 0, 0)),        # b1
                pl.BlockSpec((C, nf), lambda n: (0, 0)),              # wo
                pl.BlockSpec((C, 1), lambda n: (0, 0)),               # bo
            ],
            out_specs=pl.BlockSpec((1, C, tp), lambda n: (n, 0, 0)),
        ),
        compiler_params=pltpu.CompilerParams(
            dimension_semantics=("parallel",),
            vmem_limit_bytes=vmem_limit),
    )(x_p, mask_p,
      params["w_in"].astype(bf16), params["b_in"],
      wd_flat.astype(bf16), params["bd"],
      params["w1"].astype(bf16), params["b1"],
      params["wo"].astype(bf16), params["bo"])

    return out_p[:, :, :T]


# ----------------------------------------------------------------------------
# Pure-JAX reference (same math, f32, no Pallas) for a sanity check.
# ----------------------------------------------------------------------------
def ss_tcn_reference(x, mask, params, dilations):
    def one(xb, mb):
        h = params["w_in"] @ xb + params["b_in"]
        F_, T = h.shape
        for i, d in enumerate(dilations):
            left = jnp.concatenate([jnp.zeros((F_, d)), h[:, :T - d]], axis=1)
            right = jnp.concatenate([h[:, d:], jnp.zeros((F_, d))], axis=1)
            y = (params["wd"][i, 0] @ left + params["wd"][i, 1] @ h
                 + params["wd"][i, 2] @ right + params["bd"][i])
            y = jnp.maximum(y, 0.0)
            y = params["w1"][i] @ y + params["b1"][i]
            h = h + y
        return (params["wo"] @ h + params["bo"]) * mb[0:1, :]
    return jax.vmap(one)(x, mask)


# ----------------------------------------------------------------------------
# Deterministic parameter init (shapes follow SS_TCN.__init__)
# ----------------------------------------------------------------------------
def init_params(key, num_layers, num_f_maps, dim, num_classes):
    ks = jax.random.split(key, 8)
    s = 0.1
    return {
        "w_in": s * jax.random.normal(ks[0], (num_f_maps, dim), jnp.float32),
        "b_in": s * jax.random.normal(ks[1], (num_f_maps, 1), jnp.float32),
        # dilated conv weights, stored as (L, tap, C_out, C_in)
        "wd": s * jax.random.normal(ks[2], (num_layers, 3, num_f_maps, num_f_maps),
                                    jnp.float32),
        "bd": s * jax.random.normal(ks[3], (num_layers, num_f_maps, 1), jnp.float32),
        "w1": s * jax.random.normal(ks[4], (num_layers, num_f_maps, num_f_maps),
                                    jnp.float32),
        "b1": s * jax.random.normal(ks[5], (num_layers, num_f_maps, 1), jnp.float32),
        "wo": s * jax.random.normal(ks[6], (num_classes, num_f_maps), jnp.float32),
        "bo": s * jax.random.normal(ks[7], (num_classes, 1), jnp.float32),
    }


if __name__ == "__main__":
    # SS_TCN(num_layers=3, num_f_maps=8, dim=4, num_classes=4)
    num_layers, num_f_maps, dim, num_classes = 3, 8, 4, 4
    N, T = 2, 16
    dilations = tuple(2 ** i for i in range(num_layers))  # (1, 2, 4)

    key = jax.random.PRNGKey(0)
    kx, km, kp = jax.random.split(key, 3)

    x = jax.random.normal(kx, (N, dim, T), jnp.float32)           # NCT
    # binary mask (N, num_classes, T), last few frames of sample 1 masked out
    mask = jnp.ones((N, num_classes, T), jnp.float32)
    mask = mask.at[1, :, T - 4:].set(0.0)

    params = init_params(kp, num_layers, num_f_maps, dim, num_classes)

    out = ss_tcn_forward(x, mask, params, dilations)
    out = jax.block_until_ready(out)

    ref = ss_tcn_reference(x, mask, params, dilations)
    assert out.shape == (N, num_classes, T)
    # Kernel uses bf16 matmul operands (f32 accumulation) vs. an f32 reference.
    assert jnp.allclose(out, ref, atol=2e-2, rtol=2e-2), "mismatch vs reference"

    print("KERNEL_OK")
</pallas_src>

<mosaic_0001>
module attributes {stable_mosaic.version = 11 : i64} {
  func.func @ss_tcn_kernel(%arg0: i32, %arg1: memref<1x4x128xbf16, #tpu.memory_space<vmem>>, %arg2: memref<1x1x128xf32, #tpu.memory_space<vmem>>, %arg3: memref<8x4xbf16, #tpu.memory_space<vmem>>, %arg4: memref<8x1xf32, #tpu.memory_space<vmem>>, %arg5: memref<9x8x8xbf16, #tpu.memory_space<vmem>>, %arg6: memref<3x8x1xf32, #tpu.memory_space<vmem>>, %arg7: memref<3x8x8xbf16, #tpu.memory_space<vmem>>, %arg8: memref<3x8x1xf32, #tpu.memory_space<vmem>>, %arg9: memref<4x8xbf16, #tpu.memory_space<vmem>>, %arg10: memref<4x1xf32, #tpu.memory_space<vmem>>, %arg11: memref<1x4x128xf32, #tpu.memory_space<vmem>>) attributes {dimension_semantics = [#tpu.dimension_semantics<parallel>], iteration_bounds = array<i64: 2>, scalar_prefetch = 0 : i64, scratch_operands = 0 : i64, tpu.core_type = #tpu.core_type<tc>, window_params = [{transform_indices = @transform_0, window_bounds = array<i64: 1, 4, 128>}, {transform_indices = @transform_1, window_bounds = array<i64: 1, 1, 128>}, {pipeline_mode = #tpu.pipeline_mode<synchronous>, transform_indices = @transform_2, window_bounds = array<i64: 8, 4>}, {pipeline_mode = #tpu.pipeline_mode<synchronous>, transform_indices = @transform_3, window_bounds = array<i64: 8, 1>}, {pipeline_mode = #tpu.pipeline_mode<synchronous>, transform_indices = @transform_4, window_bounds = array<i64: 9, 8, 8>}, {pipeline_mode = #tpu.pipeline_mode<synchronous>, transform_indices = @transform_5, window_bounds = array<i64: 3, 8, 1>}, {pipeline_mode = #tpu.pipeline_mode<synchronous>, transform_indices = @transform_6, window_bounds = array<i64: 3, 8, 8>}, {pipeline_mode = #tpu.pipeline_mode<synchronous>, transform_indices = @transform_7, window_bounds = array<i64: 3, 8, 1>}, {pipeline_mode = #tpu.pipeline_mode<synchronous>, transform_indices = @transform_8, window_bounds = array<i64: 4, 8>}, {pipeline_mode = #tpu.pipeline_mode<synchronous>, transform_indices = @transform_9, window_bounds = array<i64: 4, 1>}, {transform_indices = @transform_10, window_bounds = array<i64: 1, 4, 128>}]} {
    %0 = tpu.iota {dimensions = array<i32: 1>} : vector<8x128xi32>
    %c0 = arith.constant 0 : index
    %c0_0 = arith.constant 0 : index
    %1 = vector.load %arg3[%c0, %c0_0] : memref<8x4xbf16, #tpu.memory_space<vmem>>, vector<8x4xbf16>
    %c0_1 = arith.constant 0 : index
    %c0_2 = arith.constant 0 : index
    %c0_3 = arith.constant 0 : index
    %2 = vector.load %arg1[%c0_1, %c0_2, %c0_3] : memref<1x4x128xbf16, #tpu.memory_space<vmem>>, vector<1x4x128xbf16>
    %3 = vector.shape_cast %2 : vector<1x4x128xbf16> to vector<4x128xbf16>
    %cst = arith.constant dense<0.000000e+00> : vector<8x128xf32>
    %4 = tpu.matmul %1, %3, %cst {dimension_numbers = #tpu.dot_dimension_numbers<[1], [0], [0], [1], [0, 0, 1, 1], [], []>} : vector<8x4xbf16>, vector<4x128xbf16>, vector<8x128xf32> -> vector<8x128xf32>
    %c0_4 = arith.constant 0 : index
    %c0_5 = arith.constant 0 : index
    %5 = vector.load %arg4[%c0_4, %c0_5] : memref<8x1xf32, #tpu.memory_space<vmem>>, vector<8x1xf32>
    %6 = vector.broadcast %5 : vector<8x1xf32> to vector<8x128xf32>
    %7 = arith.addf %4, %6 : vector<8x128xf32>
    %c1_i32 = arith.constant 1 : i32
    %8 = vector.broadcast %c1_i32 : i32 to vector<8x128xi32>
    %9 = arith.cmpi sge, %0, %8 : vector<8x128xi32>
    %c1_i32_6 = arith.constant 1 : i32
    %10 = tpu.dynamic_rotate %7 by %c1_i32_6 dim 1 : vector<8x128xf32>, i32 -> vector<8x128xf32>
    %cst_7 = arith.constant 0.000000e+00 : f32
    %11 = vector.broadcast %cst_7 : f32 to vector<8x128xf32>
    %12 = arith.select %9, %10, %11 : vector<8x128xi1>, vector<8x128xf32>
    %c15_i32 = arith.constant 15 : i32
    %13 = vector.broadcast %c15_i32 : i32 to vector<8x128xi32>
    %14 = arith.cmpi slt, %0, %13 : vector<8x128xi32>
    %c127_i32 = arith.constant 127 : i32
    %15 = tpu.dynamic_rotate %7 by %c127_i32 dim 1 : vector<8x128xf32>, i32 -> vector<8x128xf32>
    %cst_8 = arith.constant 0.000000e+00 : f32
    %16 = vector.broadcast %cst_8 : f32 to vector<8x128xf32>
    %17 = arith.select %14, %15, %16 : vector<8x128xi1>, vector<8x128xf32>
    %c0_9 = arith.constant 0 : index
    %c0_10 = arith.constant 0 : index
    %c0_11 = arith.constant 0 : index
    %18 = vector.load %arg5[%c0_9, %c0_10, %c0_11] : memref<9x8x8xbf16, #tpu.memory_space<vmem>>, vector<1x8x8xbf16>
    %19 = vector.shape_cast %18 : vector<1x8x8xbf16> to vector<8x8xbf16>
    %20 = arith.truncf %12 : vector<8x128xf32> to vector<8x128xbf16>
    %cst_12 = arith.constant dense<0.000000e+00> : vector<8x128xf32>
    %21 = tpu.matmul %19, %20, %cst_12 {dimension_numbers = #tpu.dot_dimension_numbers<[1], [0], [0], [1], [0, 0, 1, 1], [], []>} : vector<8x8xbf16>, vector<8x128xbf16>, vector<8x128xf32> -> vector<8x128xf32>
    %c1 = arith.constant 1 : index
    %c0_13 = arith.constant 0 : index
    %c0_14 = arith.constant 0 : index
    %22 = vector.load %arg5[%c1, %c0_13, %c0_14] : memref<9x8x8xbf16, #tpu.memory_space<vmem>>, vector<1x8x8xbf16>
    %23 = vector.shape_cast %22 : vector<1x8x8xbf16> to vector<8x8xbf16>
    %24 = arith.truncf %7 : vector<8x128xf32> to vector<8x128xbf16>
    %cst_15 = arith.constant dense<0.000000e+00> : vector<8x128xf32>
    %25 = tpu.matmul %23, %24, %cst_15 {dimension_numbers = #tpu.dot_dimension_numbers<[1], [0], [0], [1], [0, 0, 1, 1], [], []>} : vector<8x8xbf16>, vector<8x128xbf16>, vector<8x128xf32> -> vector<8x128xf32>
    %26 = arith.addf %21, %25 : vector<8x128xf32>
    %c2 = arith.constant 2 : index
    %c0_16 = arith.constant 0 : index
    %c0_17 = arith.constant 0 : index
    %27 = vector.load %arg5[%c2, %c0_16, %c0_17] : memref<9x8x8xbf16, #tpu.memory_space<vmem>>, vector<1x8x8xbf16>
    %28 = vector.shape_cast %27 : vector<1x8x8xbf16> to vector<8x8xbf16>
    %29 = arith.truncf %17 : vector<8x128xf32> to vector<8x128xbf16>
    %cst_18 = arith.constant dense<0.000000e+00> : vector<8x128xf32>
    %30 = tpu.matmul %28, %29, %cst_18 {dimension_numbers = #tpu.dot_dimension_numbers<[1], [0], [0], [1], [0, 0, 1, 1], [], []>} : vector<8x8xbf16>, vector<8x128xbf16>, vector<8x128xf32> -> vector<8x128xf32>
    %31 = arith.addf %26, %30 : vector<8x128xf32>
    %c0_19 = arith.constant 0 : index
    %c0_20 = arith.constant 0 : index
    %c0_21 = arith.constant 0 : index
    %32 = vector.load %arg6[%c0_19, %c0_20, %c0_21] : memref<3x8x1xf32, #tpu.memory_space<vmem>>, vector<1x8x1xf32>
    %33 = vector.shape_cast %32 : vector<1x8x1xf32> to vector<8x1xf32>
    %34 = vector.broadcast %33 : vector<8x1xf32> to vector<8x128xf32>
    %35 = arith.addf %31, %34 : vector<8x128xf32>
    %cst_22 = arith.constant 0.000000e+00 : f32
    %36 = vector.broadcast %cst_22 : f32 to vector<8x128xf32>
    %37 = arith.maximumf %35, %36 : vector<8x128xf32>
    %c0_23 = arith.constant 0 : index
    %c0_24 = arith.constant 0 : index
    %c0_25 = arith.constant 0 : index
    %38 = vector.load %arg7[%c0_23, %c0_24, %c0_25] : memref<3x8x8xbf16, #tpu.memory_space<vmem>>, vector<1x8x8xbf16>
    %39 = vector.shape_cast %38 : vector<1x8x8xbf16> to vector<8x8xbf16>
    %40 = arith.truncf %37 : vector<8x128xf32> to vector<8x128xbf16>
    %cst_26 = arith.constant dense<0.000000e+00> : vector<8x128xf32>
    %41 = tpu.matmul %39, %40, %cst_26 {dimension_numbers = #tpu.dot_dimension_numbers<[1], [0], [0], [1], [0, 0, 1, 1], [], []>} : vector<8x8xbf16>, vector<8x128xbf16>, vector<8x128xf32> -> vector<8x128xf32>
    %c0_27 = arith.constant 0 : index
    %c0_28 = arith.constant 0 : index
    %c0_29 = arith.constant 0 : index
    %42 = vector.load %arg8[%c0_27, %c0_28, %c0_29] : memref<3x8x1xf32, #tpu.memory_space<vmem>>, vector<1x8x1xf32>
    %43 = vector.shape_cast %42 : vector<1x8x1xf32> to vector<8x1xf32>
    %44 = vector.broadcast %43 : vector<8x1xf32> to vector<8x128xf32>
    %45 = arith.addf %41, %44 : vector<8x128xf32>
    %46 = arith.addf %7, %45 : vector<8x128xf32>
    %c2_i32 = arith.constant 2 : i32
    %47 = vector.broadcast %c2_i32 : i32 to vector<8x128xi32>
    %48 = arith.cmpi sge, %0, %47 : vector<8x128xi32>
    %c2_i32_30 = arith.constant 2 : i32
    %49 = tpu.dynamic_rotate %46 by %c2_i32_30 dim 1 : vector<8x128xf32>, i32 -> vector<8x128xf32>
    %cst_31 = arith.constant 0.000000e+00 : f32
    %50 = vector.broadcast %cst_31 : f32 to vector<8x128xf32>
    %51 = arith.select %48, %49, %50 : vector<8x128xi1>, vector<8x128xf32>
    %c14_i32 = arith.constant 14 : i32
    %52 = vector.broadcast %c14_i32 : i32 to vector<8x128xi32>
    %53 = arith.cmpi slt, %0, %52 : vector<8x128xi32>
    %c126_i32 = arith.constant 126 : i32
    %54 = tpu.dynamic_rotate %46 by %c126_i32 dim 1 : vector<8x128xf32>, i32 -> vector<8x128xf32>
    %cst_32 = arith.constant 0.000000e+00 : f32
    %55 = vector.broadcast %cst_32 : f32 to vector<8x128xf32>
    %56 = arith.select %53, %54, %55 : vector<8x128xi1>, vector<8x128xf32>
    %c3 = arith.constant 3 : index
    %c0_33 = arith.constant 0 : index
    %c0_34 = arith.constant 0 : index
    %57 = vector.load %arg5[%c3, %c0_33, %c0_34] : memref<9x8x8xbf16, #tpu.memory_space<vmem>>, vector<1x8x8xbf16>
    %58 = vector.shape_cast %57 : vector<1x8x8xbf16> to vector<8x8xbf16>
    %59 = arith.truncf %51 : vector<8x128xf32> to vector<8x128xbf16>
    %cst_35 = arith.constant dense<0.000000e+00> : vector<8x128xf32>
    %60 = tpu.matmul %58, %59, %cst_35 {dimension_numbers = #tpu.dot_dimension_numbers<[1], [0], [0], [1], [0, 0, 1, 1], [], []>} : vector<8x8xbf16>, vector<8x128xbf16>, vector<8x128xf32> -> vector<8x128xf32>
    %c4 = arith.constant 4 : index
    %c0_36 = arith.constant 0 : index
    %c0_37 = arith.constant 0 : index
    %61 = vector.load %arg5[%c4, %c0_36, %c0_37] : memref<9x8x8xbf16, #tpu.memory_space<vmem>>, vector<1x8x8xbf16>
    %62 = vector.shape_cast %61 : vector<1x8x8xbf16> to vector<8x8xbf16>
    %63 = arith.truncf %46 : vector<8x128xf32> to vector<8x128xbf16>
    %cst_38 = arith.constant dense<0.000000e+00> : vector<8x128xf32>
    %64 = tpu.matmul %62, %63, %cst_38 {dimension_numbers = #tpu.dot_dimension_numbers<[1], [0], [0], [1], [0, 0, 1, 1], [], []>} : vector<8x8xbf16>, vector<8x128xbf16>, vector<8x128xf32> -> vector<8x128xf32>
    %65 = arith.addf %60, %64 : vector<8x128xf32>
    %c5 = arith.constant 5 : index
    %c0_39 = arith.constant 0 : index
    %c0_40 = arith.constant 0 : index
    %66 = vector.load %arg5[%c5, %c0_39, %c0_40] : memref<9x8x8xbf16, #tpu.memory_space<vmem>>, vector<1x8x8xbf16>
    %67 = vector.shape_cast %66 : vector<1x8x8xbf16> to vector<8x8xbf16>
    %68 = arith.truncf %56 : vector<8x128xf32> to vector<8x128xbf16>
    %cst_41 = arith.constant dense<0.000000e+00> : vector<8x128xf32>
    %69 = tpu.matmul %67, %68, %cst_41 {dimension_numbers = #tpu.dot_dimension_numbers<[1], [0], [0], [1], [0, 0, 1, 1], [], []>} : vector<8x8xbf16>, vector<8x128xbf16>, vector<8x128xf32> -> vector<8x128xf32>
    %70 = arith.addf %65, %69 : vector<8x128xf32>
    %c1_42 = arith.constant 1 : index
    %c0_43 = arith.constant 0 : index
    %c0_44 = arith.constant 0 : index
    %71 = vector.load %arg6[%c1_42, %c0_43, %c0_44] : memref<3x8x1xf32, #tpu.memory_space<vmem>>, vector<1x8x1xf32>
    %72 = vector.shape_cast %71 : vector<1x8x1xf32> to vector<8x1xf32>
    %73 = vector.broadcast %72 : vector<8x1xf32> to vector<8x128xf32>
    %74 = arith.addf %70, %73 : vector<8x128xf32>
    %cst_45 = arith.constant 0.000000e+00 : f32
    %75 = vector.broadcast %cst_45 : f32 to vector<8x128xf32>
    %76 = arith.maximumf %74, %75 : vector<8x128xf32>
    %c1_46 = arith.constant 1 : index
    %c0_47 = arith.constant 0 : index
    %c0_48 = arith.constant 0 : index
    %77 = vector.load %arg7[%c1_46, %c0_47, %c0_48] : memref<3x8x8xbf16, #tpu.memory_space<vmem>>, vector<1x8x8xbf16>
    %78 = vector.shape_cast %77 : vector<1x8x8xbf16> to vector<8x8xbf16>
    %79 = arith.truncf %76 : vector<8x128xf32> to vector<8x128xbf16>
    %cst_49 = arith.constant dense<0.000000e+00> : vector<8x128xf32>
    %80 = tpu.matmul %78, %79, %cst_49 {dimension_numbers = #tpu.dot_dimension_numbers<[1], [0], [0], [1], [0, 0, 1, 1], [], []>} : vector<8x8xbf16>, vector<8x128xbf16>, vector<8x128xf32> -> vector<8x128xf32>
    %c1_50 = arith.constant 1 : index
    %c0_51 = arith.constant 0 : index
    %c0_52 = arith.constant 0 : index
    %81 = vector.load %arg8[%c1_50, %c0_51, %c0_52] : memref<3x8x1xf32, #tpu.memory_space<vmem>>, vector<1x8x1xf32>
    %82 = vector.shape_cast %81 : vector<1x8x1xf32> to vector<8x1xf32>
    %83 = vector.broadcast %82 : vector<8x1xf32> to vector<8x128xf32>
    %84 = arith.addf %80, %83 : vector<8x128xf32>
    %85 = arith.addf %46, %84 : vector<8x128xf32>
    %c4_i32 = arith.constant 4 : i32
    %86 = vector.broadcast %c4_i32 : i32 to vector<8x128xi32>
    %87 = arith.cmpi sge, %0, %86 : vector<8x128xi32>
    %c4_i32_53 = arith.constant 4 : i32
    %88 = tpu.dynamic_rotate %85 by %c4_i32_53 dim 1 : vector<8x128xf32>, i32 -> vector<8x128xf32>
    %cst_54 = arith.constant 0.000000e+00 : f32
    %89 = vector.broadcast %cst_54 : f32 to vector<8x128xf32>
    %90 = arith.select %87, %88, %89 : vector<8x128xi1>, vector<8x128xf32>
    %c12_i32 = arith.constant 12 : i32
    %91 = vector.broadcast %c12_i32 : i32 to vector<8x128xi32>
    %92 = arith.cmpi slt, %0, %91 : vector<8x128xi32>
    %c124_i32 = arith.constant 124 : i32
    %93 = tpu.dynamic_rotate %85 by %c124_i32 dim 1 : vector<8x128xf32>, i32 -> vector<8x128xf32>
    %cst_55 = arith.constant 0.000000e+00 : f32
    %94 = vector.broadcast %cst_55 : f32 to vector<8x128xf32>
    %95 = arith.select %92, %93, %94 : vector<8x128xi1>, vector<8x128xf32>
    %c6 = arith.constant 6 : index
    %c0_56 = arith.constant 0 : index
    %c0_57 = arith.constant 0 : index
    %96 = vector.load %arg5[%c6, %c0_56, %c0_57] : memref<9x8x8xbf16, #tpu.memory_space<vmem>>, vector<1x8x8xbf16>
    %97 = vector.shape_cast %96 : vector<1x8x8xbf16> to vector<8x8xbf16>
    %98 = arith.truncf %90 : vector<8x128xf32> to vector<8x128xbf16>
    %cst_58 = arith.constant dense<0.000000e+00> : vector<8x128xf32>
    %99 = tpu.matmul %97, %98, %cst_58 {dimension_numbers = #tpu.dot_dimension_numbers<[1], [0], [0], [1], [0, 0, 1, 1], [], []>} : vector<8x8xbf16>, vector<8x128xbf16>, vector<8x128xf32> -> vector<8x128xf32>
    %c7 = arith.constant 7 : index
    %c0_59 = arith.constant 0 : index
    %c0_60 = arith.constant 0 : index
    %100 = vector.load %arg5[%c7, %c0_59, %c0_60] : memref<9x8x8xbf16, #tpu.memory_space<vmem>>, vector<1x8x8xbf16>
    %101 = vector.shape_cast %100 : vector<1x8x8xbf16> to vector<8x8xbf16>
    %102 = arith.truncf %85 : vector<8x128xf32> to vector<8x128xbf16>
    %cst_61 = arith.constant dense<0.000000e+00> : vector<8x128xf32>
    %103 = tpu.matmul %101, %102, %cst_61 {dimension_numbers = #tpu.dot_dimension_numbers<[1], [0], [0], [1], [0, 0, 1, 1], [], []>} : vector<8x8xbf16>, vector<8x128xbf16>, vector<8x128xf32> -> vector<8x128xf32>
    %104 = arith.addf %99, %103 : vector<8x128xf32>
    %c8 = arith.constant 8 : index
    %c0_62 = arith.constant 0 : index
    %c0_63 = arith.constant 0 : index
    %105 = vector.load %arg5[%c8, %c0_62, %c0_63] : memref<9x8x8xbf16, #tpu.memory_space<vmem>>, vector<1x8x8xbf16>
    %106 = vector.shape_cast %105 : vector<1x8x8xbf16> to vector<8x8xbf16>
    %107 = arith.truncf %95 : vector<8x128xf32> to vector<8x128xbf16>
    %cst_64 = arith.constant dense<0.000000e+00> : vector<8x128xf32>
    %108 = tpu.matmul %106, %107, %cst_64 {dimension_numbers = #tpu.dot_dimension_numbers<[1], [0], [0], [1], [0, 0, 1, 1], [], []>} : vector<8x8xbf16>, vector<8x128xbf16>, vector<8x128xf32> -> vector<8x128xf32>
    %109 = arith.addf %104, %108 : vector<8x128xf32>
    %c2_65 = arith.constant 2 : index
    %c0_66 = arith.constant 0 : index
    %c0_67 = arith.constant 0 : index
    %110 = vector.load %arg6[%c2_65, %c0_66, %c0_67] : memref<3x8x1xf32, #tpu.memory_space<vmem>>, vector<1x8x1xf32>
    %111 = vector.shape_cast %110 : vector<1x8x1xf32> to vector<8x1xf32>
    %112 = vector.broadcast %111 : vector<8x1xf32> to vector<8x128xf32>
    %113 = arith.addf %109, %112 : vector<8x128xf32>
    %cst_68 = arith.constant 0.000000e+00 : f32
    %114 = vector.broadcast %cst_68 : f32 to vector<8x128xf32>
    %115 = arith.maximumf %113, %114 : vector<8x128xf32>
    %c2_69 = arith.constant 2 : index
    %c0_70 = arith.constant 0 : index
    %c0_71 = arith.constant 0 : index
    %116 = vector.load %arg7[%c2_69, %c0_70, %c0_71] : memref<3x8x8xbf16, #tpu.memory_space<vmem>>, vector<1x8x8xbf16>
    %117 = vector.shape_cast %116 : vector<1x8x8xbf16> to vector<8x8xbf16>
    %118 = arith.truncf %115 : vector<8x128xf32> to vector<8x128xbf16>
    %cst_72 = arith.constant dense<0.000000e+00> : vector<8x128xf32>
    %119 = tpu.matmul %117, %118, %cst_72 {dimension_numbers = #tpu.dot_dimension_numbers<[1], [0], [0], [1], [0, 0, 1, 1], [], []>} : vector<8x8xbf16>, vector<8x128xbf16>, vector<8x128xf32> -> vector<8x128xf32>
    %c2_73 = arith.constant 2 : index
    %c0_74 = arith.constant 0 : index
    %c0_75 = arith.constant 0 : index
    %120 = vector.load %arg8[%c2_73, %c0_74, %c0_75] : memref<3x8x1xf32, #tpu.memory_space<vmem>>, vector<1x8x1xf32>
    %121 = vector.shape_cast %120 : vector<1x8x1xf32> to vector<8x1xf32>
    %122 = vector.broadcast %121 : vector<8x1xf32> to vector<8x128xf32>
    %123 = arith.addf %119, %122 : vector<8x128xf32>
    %124 = arith.addf %85, %123 : vector<8x128xf32>
    %c0_76 = arith.constant 0 : index
    %c0_77 = arith.constant 0 : index
    %c0_78 = arith.constant 0 : index
    %125 = vector.load %arg2[%c0_76, %c0_77, %c0_78] : memref<1x1x128xf32, #tpu.memory_space<vmem>>, vector<1x1x128xf32>
    %126 = vector.shape_cast %125 : vector<1x1x128xf32> to vector<1x128xf32>
    %c0_79 = arith.constant 0 : index
    %c0_80 = arith.constant 0 : index
    %127 = vector.load %arg9[%c0_79, %c0_80] : memref<4x8xbf16, #tpu.memory_space<vmem>>, vector<4x8xbf16>
    %128 = arith.truncf %124 : vector<8x128xf32> to vector<8x128xbf16>
    %cst_81 = arith.constant dense<0.000000e+00> : vector<4x128xf32>
    %129 = tpu.matmul %127, %128, %cst_81 {dimension_numbers = #tpu.dot_dimension_numbers<[1], [0], [0], [1], [0, 0, 1, 1], [], []>} : vector<4x8xbf16>, vector<8x128xbf16>, vector<4x128xf32> -> vector<4x128xf32>
    %c0_82 = arith.constant 0 : index
    %c0_83 = arith.constant 0 : index
    %130 = vector.load %arg10[%c0_82, %c0_83] : memref<4x1xf32, #tpu.memory_space<vmem>>, vector<4x1xf32>
    %131 = vector.broadcast %130 : vector<4x1xf32> to vector<4x128xf32>
    %132 = arith.addf %129, %131 : vector<4x128xf32>
    %133 = vector.broadcast %126 : vector<1x128xf32> to vector<4x128xf32>
    %134 = arith.mulf %132, %133 : vector<4x128xf32>
    %c0_84 = arith.constant 0 : index
    %c0_85 = arith.constant 0 : index
    %c0_86 = arith.constant 0 : index
    %135 = vector.load %arg11[%c0_84, %c0_85, %c0_86] : memref<1x4x128xf32, #tpu.memory_space<vmem>>, vector<1x4x128xf32>
    %136 = vector.shape_cast %135 : vector<1x4x128xf32> to vector<4x128xf32>
    %137 = vector.shape_cast %134 : vector<4x128xf32> to vector<1x4x128xf32>
    tpu.vector_store %arg11[%c0_84, %c0_85, %c0_86], %137 {strides = array<i32>} : memref<1x4x128xf32, #tpu.memory_space<vmem>>, vector<1x4x128xf32>,
    return
  }
  func.func @transform_0(%arg0: i32) -> (i32, i32, i32) {
    %c0_i32 = arith.constant 0 : i32
    %c0_i32_0 = arith.constant 0 : i32
    %c0_i32_1 = arith.constant 0 : i32
    return %arg0, %c0_i32, %c0_i32_0 : i32, i32, i32
  }
  func.func @transform_1(%arg0: i32) -> (i32, i32, i32) {
    %c0_i32 = arith.constant 0 : i32
    %c0_i32_0 = arith.constant 0 : i32
    %c0_i32_1 = arith.constant 0 : i32
    return %arg0, %c0_i32, %c0_i32_0 : i32, i32, i32
  }
  func.func @transform_2(%arg0: i32) -> (i32, i32) {
    %c0_i32 = arith.constant 0 : i32
    %c0_i32_0 = arith.constant 0 : i32
    %c0_i32_1 = arith.constant 0 : i32
    return %c0_i32, %c0_i32_0 : i32, i32
  }
  func.func @transform_3(%arg0: i32) -> (i32, i32) {
    %c0_i32 = arith.constant 0 : i32
    %c0_i32_0 = arith.constant 0 : i32
    %c0_i32_1 = arith.constant 0 : i32
    return %c0_i32, %c0_i32_0 : i32, i32
  }
  func.func @transform_4(%arg0: i32) -> (i32, i32, i32) {
    %c0_i32 = arith.constant 0 : i32
    %c0_i32_0 = arith.constant 0 : i32
    %c0_i32_1 = arith.constant 0 : i32
    %c0_i32_2 = arith.constant 0 : i32
    return %c0_i32, %c0_i32_0, %c0_i32_1 : i32, i32, i32
  }
  func.func @transform_5(%arg0: i32) -> (i32, i32, i32) {
    %c0_i32 = arith.constant 0 : i32
    %c0_i32_0 = arith.constant 0 : i32
    %c0_i32_1 = arith.constant 0 : i32
    %c0_i32_2 = arith.constant 0 : i32
    return %c0_i32, %c0_i32_0, %c0_i32_1 : i32, i32, i32
  }
  func.func @transform_6(%arg0: i32) -> (i32, i32, i32) {
    %c0_i32 = arith.constant 0 : i32
    %c0_i32_0 = arith.constant 0 : i32
    %c0_i32_1 = arith.constant 0 : i32
    %c0_i32_2 = arith.constant 0 : i32
    return %c0_i32, %c0_i32_0, %c0_i32_1 : i32, i32, i32
  }
  func.func @transform_7(%arg0: i32) -> (i32, i32, i32) {
    %c0_i32 = arith.constant 0 : i32
    %c0_i32_0 = arith.constant 0 : i32
    %c0_i32_1 = arith.constant 0 : i32
    %c0_i32_2 = arith.constant 0 : i32
    return %c0_i32, %c0_i32_0, %c0_i32_1 : i32, i32, i32
  }
  func.func @transform_8(%arg0: i32) -> (i32, i32) {
    %c0_i32 = arith.constant 0 : i32
    %c0_i32_0 = arith.constant 0 : i32
    %c0_i32_1 = arith.constant 0 : i32
    return %c0_i32, %c0_i32_0 : i32, i32
  }
  func.func @transform_9(%arg0: i32) -> (i32, i32) {
    %c0_i32 = arith.constant 0 : i32
    %c0_i32_0 = arith.constant 0 : i32
    %c0_i32_1 = arith.constant 0 : i32
    return %c0_i32, %c0_i32_0 : i32, i32
  }
  func.func @transform_10(%arg0: i32) -> (i32, i32, i32) {
    %c0_i32 = arith.constant 0 : i32
    %c0_i32_0 = arith.constant 0 : i32
    %c0_i32_1 = arith.constant 0 : i32
    return %arg0, %c0_i32, %c0_i32_0 : i32, i32, i32
  }
}

</mosaic_0001>

<llo_original>
// kernel: tpu_custom_call.1
$region0: #{tpu_custom_call.1}
  #allocation0 [shape = 'u32[]', space=smem, size = 0x4, offset = 0x4, fixed_abs, tag = 'smem constant byte address 0x4 - core index']
  #allocation1 [shape = 'u32[72,128]{1,0:T(1,128)}', space=vmem, size = 0x9000, scoped, tag = 'internal scratch']
  %s0 = inlined_call_operand.vmem [shape: bf16[2,4,128], index: 0, kind: input, shape index: {}]
  %s1 = inlined_call_operand.vmem [shape: f32[2,1,128], index: 1, kind: input, shape index: {}]
  %s2 = inlined_call_operand.vmem [shape: bf16[8,4], index: 2, kind: input, shape index: {}]
  %s3 = inlined_call_operand.vmem [shape: f32[8,1], index: 3, kind: input, shape index: {}]
  %s4 = inlined_call_operand.vmem [shape: bf16[9,8,8], index: 4, kind: input, shape index: {}]
  %s5 = inlined_call_operand.vmem [shape: f32[3,8,1], index: 5, kind: input, shape index: {}]
  %s6 = inlined_call_operand.vmem [shape: bf16[3,8,8], index: 6, kind: input, shape index: {}]
  %s7 = inlined_call_operand.vmem [shape: f32[3,8,1], index: 7, kind: input, shape index: {}]
  %s8 = inlined_call_operand.vmem [shape: bf16[4,8], index: 8, kind: input, shape index: {}]
  %s9 = inlined_call_operand.vmem [shape: f32[4,1], index: 9, kind: input, shape index: {}]
  %s10 = inlined_call_operand.hbm [shape: f32[2,4,128], index: 10, kind: output, shape index: {}]
  %s11 = sld [smem:[#allocation0]]
  $region73: #{tpu_custom_call.1} parent=0
    _
  %s13 = ssub.s32 1, %s11
  %s14 = scalar_select 0, %s13, %s11
  $region1: #{tpu_custom_call.1} parent=0
    #allocation2 [shape = 'u8[4096]{0}', space=vmem, size = 0x1000, scoped, tag = 'output window, operand 0']
    #allocation3 [shape = 's32[2]{0}', space=sflag, size = 0x8, scoped, tag = 'scoped memory for tpu_custom_call.1']
    %15 = vsyncpa [#allocation3], 0
    %s16 = scalar_lea.sflag [#allocation3], 1
    %17 = vsyncpa %s16, 0
    loop: start=0, step=1, limit=4
    $region2: #{tpu_custom_call.1} parent=1 // loop_pre_header
      _
    $region3: #{tpu_custom_call.1} parent=1 // loop_header
      %s19 = sphi 0, %s23
      %p20 = scmp.ge.s32.totalorder %s19, 4
      %s29 = sphi 0, %s31
      %s32 = sphi 0, %s29
      %s33 = sphi 0, %s32
      %s49 = sphi 0, %s33
      %s55 = sphi 0, %s57
      %s58 = sphi 0, %s55
      %s59 = sphi 0, %s58
      %s75 = sphi 0, %s59
      %s79 = sphi 0, %s79
      %s81 = sphi 0, %s79
      %s82 = sphi 0, %s81
      %s96 = sphi 0, %s82
      %s100 = sphi 0, %s100
      %s102 = sphi 0, %s100
      %s103 = sphi 0, %s102
      %s117 = sphi 0, %s103
      %s121 = sphi 0, %s121
      %s123 = sphi 0, %s121
      %s124 = sphi 0, %s123
      %s138 = sphi 0, %s124
      %s142 = sphi 0, %s142
      %s144 = sphi 0, %s142
      %s145 = sphi 0, %s144
      %s159 = sphi 0, %s145
      %s163 = sphi 0, %s163
      %s165 = sphi 0, %s163
      %s166 = sphi 0, %s165
      %s180 = sphi 0, %s166
      %s184 = sphi 0, %s184
      %s186 = sphi 0, %s184
      %s187 = sphi 0, %s186
      %s201 = sphi 0, %s187
      %s205 = sphi 0, %s205
      %s207 = sphi 0, %s205
      %s208 = sphi 0, %s207
      %s222 = sphi 0, %s208
      %s226 = sphi 0, %s226
      %s228 = sphi 0, %s226
      %s229 = sphi 0, %s228
      %s243 = sphi 0, %s229
      %s249 = sphi 0, %s251
      %s252 = sphi 0, %s249
      %s253 = sphi 0, %s252
      %s269 = sphi 0, %s253
    $region4: #{tpu_custom_call.1} parent=1 // loop_header_branch
      %22 = sbr.rel (%p20) target = $region8
    $region5: #{tpu_custom_call.1} parent=1 // loop_body
      %s24 = ssub.s32 %s19, 1
      %s25 = ssub.s32 %s19, 2
      %s26 = sadd.s32 %s19, 1
      %s27 = ssub.s32 %s19, %s26
      %p28 = scmp.eq.s32.totalorder %s27, 0
      %s30 = sadd.s32 %s29, 1
      %s31 = scalar_select %p28, %s29, %s30
      %p34 = pneg %p28
      %p35 = scmp.eq.s32.totalorder %s19, 1
      %p36 = por %p34, %p35
      %p37 = scmp.ne.s32.totalorder %s29, %s32
      %p38 = scmp.eq.s32.totalorder %s19, 0
      %p39 = por %p37, %p38
      %p40 = scmp.ne.s32.totalorder %s29, %s32
      %p41 = scmp.eq.s32.totalorder %s24, 1
      %p42 = por %p40, %p41
      %p43 = scmp.ne.s32.totalorder %s32, %s33
      %p44 = scmp.eq.s32.totalorder %s24, 0
      %p45 = por %p43, %p44
      %p46 = scmp.ne.s32.totalorder %s32, %s33
      %p47 = scmp.eq.s32.totalorder %s25, 1
      %p48 = por %p46, %p47
      %p50 = scmp.ne.s32.totalorder %s33, %s49
      %p51 = scmp.eq.s32.totalorder %s25, 0
      %p52 = por %p50, %p51
      %s53 = ssub.s32 %s19, %s26
      %p54 = scmp.eq.s32.totalorder %s53, 0
      %s56 = sadd.s32 %s55, 1
      %s57 = scalar_select %p54, %s55, %s56
      %p60 = pneg %p54
      %p61 = scmp.eq.s32.totalorder %s19, 1
      %p62 = por %p60, %p61
      %p63 = scmp.ne.s32.totalorder %s55, %s58
      %p64 = scmp.eq.s32.totalorder %s19, 0
      %p65 = por %p63, %p64
      %p66 = scmp.ne.s32.totalorder %s55, %s58
      %p67 = scmp.eq.s32.totalorder %s24, 1
      %p68 = por %p66, %p67
      %p69 = scmp.ne.s32.totalorder %s58, %s59
      %p70 = scmp.eq.s32.totalorder %s24, 0
      %p71 = por %p69, %p70
      %p72 = scmp.ne.s32.totalorder %s58, %s59
      %p73 = scmp.eq.s32.totalorder %s25, 1
      %p74 = por %p72, %p73
      %p76 = scmp.ne.s32.totalorder %s59, %s75
      %p77 = scmp.eq.s32.totalorder %s25, 0
      %p78 = por %p76, %p77
      %s80 = sadd.s32 %s79, 1
      %p83 = scmp.eq.s32.totalorder %s19, 1
      %p84 = scmp.ne.s32.totalorder %s79, %s81
      %p85 = scmp.eq.s32.totalorder %s19, 0
      %p86 = por %p84, %p85
      %p87 = scmp.ne.s32.totalorder %s79, %s81
      %p88 = scmp.eq.s32.totalorder %s24, 1
      %p89 = por %p87, %p88
      %p90 = scmp.ne.s32.totalorder %s81, %s82
      %p91 = scmp.eq.s32.totalorder %s24, 0
      %p92 = por %p90, %p91
      %p93 = scmp.ne.s32.totalorder %s81, %s82
      %p94 = scmp.eq.s32.totalorder %s25, 1
      %p95 = por %p93, %p94
      %p97 = scmp.ne.s32.totalorder %s82, %s96
      %p98 = scmp.eq.s32.totalorder %s25, 0
      %p99 = por %p97, %p98
      %s101 = sadd.s32 %s100, 1
      %p104 = scmp.eq.s32.totalorder %s19, 1
      %p105 = scmp.ne.s32.totalorder %s100, %s102
      %p106 = scmp.eq.s32.totalorder %s19, 0
      %p107 = por %p105, %p106
      %p108 = scmp.ne.s32.totalorder %s100, %s102
      %p109 = scmp.eq.s32.totalorder %s24, 1
      %p110 = por %p108, %p109
      %p111 = scmp.ne.s32.totalorder %s102, %s103
      %p112 = scmp.eq.s32.totalorder %s24, 0
      %p113 = por %p111, %p112
      %p114 = scmp.ne.s32.totalorder %s102, %s103
      %p115 = scmp.eq.s32.totalorder %s25, 1
      %p116 = por %p114, %p115
      %p118 = scmp.ne.s32.totalorder %s103, %s117
      %p119 = scmp.eq.s32.totalorder %s25, 0
      %p120 = por %p118, %p119
      %s122 = sadd.s32 %s121, 1
      %p125 = scmp.eq.s32.totalorder %s19, 1
      %p126 = scmp.ne.s32.totalorder %s121, %s123
      %p127 = scmp.eq.s32.totalorder %s19, 0
      %p128 = por %p126, %p127
      %p129 = scmp.ne.s32.totalorder %s121, %s123
      %p130 = scmp.eq.s32.totalorder %s24, 1
      %p131 = por %p129, %p130
      %p132 = scmp.ne.s32.totalorder %s123, %s124
      %p133 = scmp.eq.s32.totalorder %s24, 0
      %p134 = por %p132, %p133
      %p135 = scmp.ne.s32.totalorder %s123, %s124
      %p136 = scmp.eq.s32.totalorder %s25, 1
      %p137 = por %p135, %p136
      %p139 = scmp.ne.s32.totalorder %s124, %s138
      %p140 = scmp.eq.s32.totalorder %s25, 0
      %p141 = por %p139, %p140
      %s143 = sadd.s32 %s142, 1
      %p146 = scmp.eq.s32.totalorder %s19, 1
      %p147 = scmp.ne.s32.totalorder %s142, %s144
      %p148 = scmp.eq.s32.totalorder %s19, 0
      %p149 = por %p147, %p148
      %p150 = scmp.ne.s32.totalorder %s142, %s144
      %p151 = scmp.eq.s32.totalorder %s24, 1
      %p152 = por %p150, %p151
      %p153 = scmp.ne.s32.totalorder %s144, %s145
      %p154 = scmp.eq.s32.totalorder %s24, 0
      %p155 = por %p153, %p154
      %p156 = scmp.ne.s32.totalorder %s144, %s145
      %p157 = scmp.eq.s32.totalorder %s25, 1
      %p158 = por %p156, %p157
      %p160 = scmp.ne.s32.totalorder %s145, %s159
      %p161 = scmp.eq.s32.totalorder %s25, 0
      %p162 = por %p160, %p161
      %s164 = sadd.s32 %s163, 1
      %p167 = scmp.eq.s32.totalorder %s19, 1
      %p168 = scmp.ne.s32.totalorder %s163, %s165
      %p169 = scmp.eq.s32.totalorder %s19, 0
      %p170 = por %p168, %p169
      %p171 = scmp.ne.s32.totalorder %s163, %s165
      %p172 = scmp.eq.s32.totalorder %s24, 1
      %p173 = por %p171, %p172
      %p174 = scmp.ne.s32.totalorder %s165, %s166
      %p175 = scmp.eq.s32.totalorder %s24, 0
      %p176 = por %p174, %p175
      %p177 = scmp.ne.s32.totalorder %s165, %s166
      %p178 = scmp.eq.s32.totalorder %s25, 1
      %p179 = por %p177, %p178
      %p181 = scmp.ne.s32.totalorder %s166, %s180
      %p182 = scmp.eq.s32.totalorder %s25, 0
      %p183 = por %p181, %p182
      %s185 = sadd.s32 %s184, 1
      %p188 = scmp.eq.s32.totalorder %s19, 1
      %p189 = scmp.ne.s32.totalorder %s184, %s186
      %p190 = scmp.eq.s32.totalorder %s19, 0
      %p191 = por %p189, %p190
      %p192 = scmp.ne.s32.totalorder %s184, %s186
      %p193 = scmp.eq.s32.totalorder %s24, 1
      %p194 = por %p192, %p193
      %p195 = scmp.ne.s32.totalorder %s186, %s187
      %p196 = scmp.eq.s32.totalorder %s24, 0
      %p197 = por %p195, %p196
      %p198 = scmp.ne.s32.totalorder %s186, %s187
      %p199 = scmp.eq.s32.totalorder %s25, 1
      %p200 = por %p198, %p199
      %p202 = scmp.ne.s32.totalorder %s187, %s201
      %p203 = scmp.eq.s32.totalorder %s25, 0
      %p204 = por %p202, %p203
      %s206 = sadd.s32 %s205, 1
      %p209 = scmp.eq.s32.totalorder %s19, 1
      %p210 = scmp.ne.s32.totalorder %s205, %s207
      %p211 = scmp.eq.s32.totalorder %s19, 0
      %p212 = por %p210, %p211
      %p213 = scmp.ne.s32.totalorder %s205, %s207
      %p214 = scmp.eq.s32.totalorder %s24, 1
      %p215 = por %p213, %p214
      %p216 = scmp.ne.s32.totalorder %s207, %s208
      %p217 = scmp.eq.s32.totalorder %s24, 0
      %p218 = por %p216, %p217
      %p219 = scmp.ne.s32.totalorder %s207, %s208
      %p220 = scmp.eq.s32.totalorder %s25, 1
      %p221 = por %p219, %p220
      %p223 = scmp.ne.s32.totalorder %s208, %s222
      %p224 = scmp.eq.s32.totalorder %s25, 0
      %p225 = por %p223, %p224
      %s227 = sadd.s32 %s226, 1
      %p230 = scmp.eq.s32.totalorder %s19, 1
      %p231 = scmp.ne.s32.totalorder %s226, %s228
      %p232 = scmp.eq.s32.totalorder %s19, 0
      %p233 = por %p231, %p232
      %p234 = scmp.ne.s32.totalorder %s226, %s228
      %p235 = scmp.eq.s32.totalorder %s24, 1
      %p236 = por %p234, %p235
      %p237 = scmp.ne.s32.totalorder %s228, %s229
      %p238 = scmp.eq.s32.totalorder %s24, 0
      %p239 = por %p237, %p238
      %p240 = scmp.ne.s32.totalorder %s228, %s229
      %p241 = scmp.eq.s32.totalorder %s25, 1
      %p242 = por %p240, %p241
      %p244 = scmp.ne.s32.totalorder %s229, %s243
      %p245 = scmp.eq.s32.totalorder %s25, 0
      %p246 = por %p244, %p245
      %s247 = ssub.s32 %s19, %s26
      %p248 = scmp.eq.s32.totalorder %s247, 0
      %s250 = sadd.s32 %s249, 1
      %s251 = scalar_select %p248, %s249, %s250
      %p254 = pneg %p248
      %p255 = scmp.eq.s32.totalorder %s19, 1
      %p256 = por %p254, %p255
      %p257 = scmp.ne.s32.totalorder %s249, %s252
      %p258 = scmp.eq.s32.totalorder %s19, 0
      %p259 = por %p257, %p258
      %p260 = scmp.ne.s32.totalorder %s249, %s252
      %p261 = scmp.eq.s32.totalorder %s24, 1
      %p262 = por %p260, %p261
      %p263 = scmp.ne.s32.totalorder %s252, %s253
      %p264 = scmp.eq.s32.totalorder %s24, 0
      %p265 = por %p263, %p264
      %p266 = scmp.ne.s32.totalorder %s252, %s253
      %p267 = scmp.eq.s32.totalorder %s25, 1
      %p268 = por %p266, %p267
      %p270 = scmp.ne.s32.totalorder %s253, %s269
      %p271 = scmp.eq.s32.totalorder %s25, 0
      %p272 = por %p270, %p271
      %p273 = scmp.le.s32.totalorder 1, %s19
      %p274 = scmp.lt.s32.totalorder %s19, 3
      %p275 = pnand %p273, %p274
      %p276 = pneg %p275
      // Predicated region
      $region9: #{tpu_custom_call.1} parent=5 // pred_check
        _
      $region10: #{tpu_custom_call.1} parent=5 // pred_check_branch
        %278 = sbr.rel (%p275) target = $region12
      $region11: #{tpu_custom_call.1} parent=5 // pred_region
        %s279 = ssub.s32 %s19, 1
        // Predicated region
        $region13: #{tpu_custom_call.1} parent=11 // pred_check
          %p280 = pneg %p92
        $region14: #{tpu_custom_call.1} parent=11 // pred_check_branch
          %282 = sbr.rel (%p280) target = $region16
        $region15: #{tpu_custom_call.1} parent=11 // pred_region
          _
        $region16: #{tpu_custom_call.1} parent=11 // pred_fallthru
          _
        // Predicated region
        $region17: #{tpu_custom_call.1} parent=11 // pred_check
          %p283 = pneg %p113
        $region18: #{tpu_custom_call.1} parent=11 // pred_check_branch
          %285 = sbr.rel (%p283) target = $region20
        $region19: #{tpu_custom_call.1} parent=11 // pred_region
          _
        $region20: #{tpu_custom_call.1} parent=11 // pred_fallthru
          _
        // Predicated region
        $region21: #{tpu_custom_call.1} parent=11 // pred_check
          %p286 = pneg %p134
        $region22: #{tpu_custom_call.1} parent=11 // pred_check_branch
          %288 = sbr.rel (%p286) target = $region24
        $region23: #{tpu_custom_call.1} parent=11 // pred_region
          _
        $region24: #{tpu_custom_call.1} parent=11 // pred_fallthru
          _
        // Predicated region
        $region25: #{tpu_custom_call.1} parent=11 // pred_check
          %p289 = pneg %p155
        $region26: #{tpu_custom_call.1} parent=11 // pred_check_branch
          %291 = sbr.rel (%p289) target = $region28
        $region27: #{tpu_custom_call.1} parent=11 // pred_region
          _
        $region28: #{tpu_custom_call.1} parent=11 // pred_fallthru
          _
        // Predicated region
        $region29: #{tpu_custom_call.1} parent=11 // pred_check
          %p292 = pneg %p176
        $region30: #{tpu_custom_call.1} parent=11 // pred_check_branch
          %294 = sbr.rel (%p292) target = $region32
        $region31: #{tpu_custom_call.1} parent=11 // pred_region
          _
        $region32: #{tpu_custom_call.1} parent=11 // pred_fallthru
          _
        // Predicated region
        $region33: #{tpu_custom_call.1} parent=11 // pred_check
          %p295 = pneg %p197
        $region34: #{tpu_custom_call.1} parent=11 // pred_check_branch
          %297 = sbr.rel (%p295) target = $region36
        $region35: #{tpu_custom_call.1} parent=11 // pred_region
          _
        $region36: #{tpu_custom_call.1} parent=11 // pred_fallthru
          _
        // Predicated region
        $region37: #{tpu_custom_call.1} parent=11 // pred_check
          %p298 = pneg %p218
        $region38: #{tpu_custom_call.1} parent=11 // pred_check_branch
          %300 = sbr.rel (%p298) target = $region40
        $region39: #{tpu_custom_call.1} parent=11 // pred_region
          _
        $region40: #{tpu_custom_call.1} parent=11 // pred_fallthru
          _
        // Predicated region
        $region41: #{tpu_custom_call.1} parent=11 // pred_check
          %p301 = pneg %p239
        $region42: #{tpu_custom_call.1} parent=11 // pred_check_branch
          %303 = sbr.rel (%p301) target = $region44
        $region43: #{tpu_custom_call.1} parent=11 // pred_region
          _
        $region44: #{tpu_custom_call.1} parent=11 // pred_fallthru
          _
      $region12: #{tpu_custom_call.1} parent=5 // pred_fallthru
        _
      %p304 = scmp.lt.s32.totalorder %s19, 2
      // Predicated region
      $region45: #{tpu_custom_call.1} parent=5 // pred_check
        %p305 = pneg %p304
      $region46: #{tpu_custom_call.1} parent=5 // pred_check_branch
        %307 = sbr.rel (%p305) target = $region48
      $region47: #{tpu_custom_call.1} parent=5 // pred_region
        // Predicated region
        $region49: #{tpu_custom_call.1} parent=47 // pred_check
          %p308 = pneg %p39
        $region50: #{tpu_custom_call.1} parent=47 // pred_check_branch
          %310 = sbr.rel (%p308) target = $region52
        $region51: #{tpu_custom_call.1} parent=47 // pred_region
          %p311 = scmp.lt.s32.totalorder %s19, 1
          %s312 = scalar_select %p311, %s19, 1
          %s313 = smul.addr %s312, 2
          %s314 = scalar_lea.vmem %s0, %s313
        $region52: #{tpu_custom_call.1} parent=47 // pred_fallthru
          _
        // Predicated region
        $region53: #{tpu_custom_call.1} parent=47 // pred_check
          %p315 = pneg %p65
        $region54: #{tpu_custom_call.1} parent=47 // pred_check_branch
          %317 = sbr.rel (%p315) target = $region56
        $region55: #{tpu_custom_call.1} parent=47 // pred_region
          %p318 = scmp.lt.s32.totalorder %s19, 1
          %s319 = scalar_select %p318, %s19, 1
          %s320 = scalar_lea.vmem %s1, %s319
        $region56: #{tpu_custom_call.1} parent=47 // pred_fallthru
          _
      $region48: #{tpu_custom_call.1} parent=5 // pred_fallthru
        _
      %p321 = scmp.le.s32.totalorder 1, %s19
      %p322 = scmp.lt.s32.totalorder %s19, 3
      %p323 = pnand %p321, %p322
      %p324 = pneg %p323
      // Predicated region
      $region57: #{tpu_custom_call.1} parent=5 // pred_check
        _
      $region58: #{tpu_custom_call.1} parent=5 // pred_check_branch
        %326 = sbr.rel (%p323) target = $region60
      $region59: #{tpu_custom_call.1} parent=5 // pred_region
        %s327 = ssub.s32 %s19, 1
        %p328 = scmp.lt.s32.totalorder %s24, 1
        %s329 = scalar_select %p328, %s24, 1
        %s330 = smul.addr %s329, 2
        %s331 = scalar_lea.vmem %s0, %s330
        %p332 = pneg %p45
        %p333 = pneg %p42
        %p334 = scmp.lt.s32.totalorder %s24, 1
        %s335 = scalar_select %p334, %s24, 1
        %s336 = scalar_lea.vmem %s1, %s335
        %p337 = pneg %p71
        %p338 = pneg %p68
        %p339 = pneg %p92
        %p340 = pneg %p89
        %p341 = pneg %p113
        %p342 = pneg %p110
        %p343 = pneg %p134
        %p344 = pneg %p131
        %p345 = pneg %p155
        %p346 = pneg %p152
        %p347 = pneg %p176
        %p348 = pneg %p173
        %p349 = pneg %p197
        %p350 = pneg %p194
        %p351 = pneg %p218
        %p352 = pneg %p215
        %p353 = pneg %p239
        %p354 = pneg %p236
        %p355 = pneg %p265
        %p356 = pneg %p262
        %s357 = sand.u32 %s252, 1
        %s358 = scalar_lea.sflag [#allocation3], %s357
        %s359 = sand.u32 %s252, 1
        %s360 = smul.addr %s359, 4
        %s361 = scalar_lea.vmem [#allocation2], %s360
        %p362 = scmp.lt.s32.totalorder %s24, 1
        %s363 = scalar_select %p362, %s24, 1
        %s364 = smul.addr %s363, 2
        %s365 = scalar_lea.vmem %s0, %s364
        %p366 = scmp.lt.s32.totalorder %s24, 1
        %s367 = scalar_select %p366, %s24, 1
        %s368 = scalar_lea.vmem %s1, %s367
        %v370 = vlaneseq
        %v371 = vand.u32 %v370, 127
        %v372 = vld [vmem:[%s2] sm:$0xf]
        %v373 = vld [vmem:[%s365] sm:$0x3]
        %v374 = vld [vmem:[%s3] sm:$0xff]
        %376 = vset.pattern.permute.xlu0 0
        %377 = vperm.xlu0 %376, %v374
        %v378 = vpop.permute.xlu0 %377
        %vm380 = vcmask 31744
        %v382 = vsel %vm380, %v372, 0
        %vm384 = vcmask 1041408
        %v386 = vsel %vm384, %v373, 0
        %388 = vmatpush.bf16.msra.mxu0 0
        %389 = vmatpush.bf16.msra.mxu0 0
        %390 = vmatpush.bf16.msra.mxu0 0
        %391 = vmatpush.bf16.msra.mxu0 0
        %392 = vmatpush.bf16.msra.mxu0 0
        %393 = vmatpush.bf16.msra.mxu0 0
        %394 = vmatpush.bf16.msra.mxu0 0
        %395 = vmatpush.bf16.msra.mxu0 %v386
        %396 = vmatmul.bf16.gmra.mxu0 %v382
        %v397 = vpop.f32.mrf.mxu0
        %v398 = vadd.f32 %v378, %v397
        %v399 = vpop.f32.mrf.mxu0
        %400 = vdwg.mxu0
        %vm401 = vcmp.ge.s32.totalorder %v371, 1
        %402 = vrot.lane.b32.xlu0 %v398, 1
        %v403 = vpop.permute.xlu0 %402
        %v404 = vsel %vm401, %v403, 0.0
        %vm405 = vcmp.lt.s32.totalorder %v371, 15
        %406 = vrot.lane.b32.xlu0 %v398, 127
        %v407 = vpop.permute.xlu0 %406
        %v408 = vsel %vm405, %v407, 0.0
        %v409 = vld [vmem:[%s4] sm:$0xf]
        %v410 = vpack.c.bf16 %v404, %v404
        %s411 = scalar_lea.vmem %s4, 4
        %v412 = vld [vmem:[%s411] sm:$0xf]
        %v413 = vpack.c.bf16 %v398, %v398
        %vm414 = vcmask 64512
        %v416 = vsel %vm414, %v412, 0
        %vm418 = vcmask 1043456
        %v420 = vsel %vm418, %v413, 0
        %422 = vmatpush.bf16.msra.mxu0 0
        %423 = vmatpush.bf16.msra.mxu0 0
        %424 = vmatpush.bf16.msra.mxu0 0
        %425 = vmatpush.bf16.msra.mxu0 0
        %426 = vmatpush.bf16.msra.mxu0 0
        %427 = vmatpush.bf16.msra.mxu0 0
        %428 = vmatpush.bf16.msra.mxu0 0
        %429 = vmatpush.bf16.msra.mxu0 %v420
        %430 = vmatmul.bf16.gmra.mxu0 %v416
        %v431 = vpop.f32.mrf.mxu0
        %v432 = vadd.f32 0.0, %v431
        %v433 = vpop.f32.mrf.mxu0
        %434 = vdwg.mxu0
        %v436 = vsel %vm414, %v409, 0
        %v439 = vsel %vm418, %v410, 0
        %441 = vmatpush.bf16.msra.mxu0 0
        %442 = vmatpush.bf16.msra.mxu0 0
        %443 = vmatpush.bf16.msra.mxu0 0
        %444 = vmatpush.bf16.msra.mxu0 0
        %445 = vmatpush.bf16.msra.mxu0 0
        %446 = vmatpush.bf16.msra.mxu0 0
        %447 = vmatpush.bf16.msra.mxu0 0
        %448 = vmatpush.bf16.msra.mxu0 %v439
        %449 = vmatmul.bf16.gmra.mxu0 %v436
        %v450 = vpop.f32.mrf.mxu0
        %v451 = vadd.f32 %v432, %v450
        %v452 = vpop.f32.mrf.mxu0
        %453 = vdwg.mxu0
        %s454 = scalar_lea.vmem %s4, 8
        %v455 = vld [vmem:[%s454] sm:$0xf]
        %v456 = vpack.c.bf16 %v408, %v408
        %v458 = vsel %vm414, %v455, 0
        %v461 = vsel %vm418, %v456, 0
        %463 = vmatpush.bf16.msra.mxu0 0
        %464 = vmatpush.bf16.msra.mxu0 0
        %465 = vmatpush.bf16.msra.mxu0 0
        %466 = vmatpush.bf16.msra.mxu0 0
        %467 = vmatpush.bf16.msra.mxu0 0
        %468 = vmatpush.bf16.msra.mxu0 0
        %469 = vmatpush.bf16.msra.mxu0 0
        %470 = vmatpush.bf16.msra.mxu0 %v461
        %471 = vmatmul.bf16.gmra.mxu0 %v458
        %v472 = vpop.f32.mrf.mxu0
        %v473 = vadd.f32 0.0, %v472
        %v474 = vpop.f32.mrf.mxu0
        %475 = vdwg.mxu0
        %v476 = vadd.f32 %v451, %v473
        %v477 = vld [vmem:[%s5] sm:$0xff]
        %479 = vset.pattern.permute.xlu0 0
        %480 = vperm.xlu0 %479, %v477
        %v481 = vpop.permute.xlu0 %480
        %v483 = vadd.f32 %v476, %v481
        %v484 = vmax.f32 %v483, 0.0
        %v485 = vld [vmem:[%s6] sm:$0xf]
        %v486 = vpack.c.bf16 %v484, %v484
        %v487 = vld [vmem:[%s7] sm:$0xff]
        %489 = vset.pattern.permute.xlu0 0
        %490 = vperm.xlu0 %489, %v487
        %v491 = vpop.permute.xlu0 %490
        %v494 = vsel %vm414, %v485, 0
        %v497 = vsel %vm418, %v486, 0
        %499 = vmatpush.bf16.msra.mxu0 0
        %500 = vmatpush.bf16.msra.mxu0 0
        %501 = vmatpush.bf16.msra.mxu0 0
        %502 = vmatpush.bf16.msra.mxu0 0
        %503 = vmatpush.bf16.msra.mxu0 0
        %504 = vmatpush.bf16.msra.mxu0 0
        %505 = vmatpush.bf16.msra.mxu0 0
        %506 = vmatpush.bf16.msra.mxu0 %v497
        %507 = vmatmul.bf16.gmra.mxu0 %v494
        %v508 = vpop.f32.mrf.mxu0
        %v509 = vadd.f32 %v491, %v508
        %v510 = vpop.f32.mrf.mxu0
        %511 = vdwg.mxu0
        %v512 = vadd.f32 %v398, %v509
        %vm513 = vcmp.ge.s32.totalorder %v371, 2
        %514 = vrot.lane.b32.xlu0 %v512, 2
        %v515 = vpop.permute.xlu0 %514
        %v516 = vsel %vm513, %v515, 0.0
        %vm517 = vcmp.lt.s32.totalorder %v371, 14
        %518 = vrot.lane.b32.xlu0 %v512, 126
        %v519 = vpop.permute.xlu0 %518
        %v520 = vsel %vm517, %v519, 0.0
        %s521 = scalar_lea.vmem %s4, 12
        %v522 = vld [vmem:[%s521] sm:$0xf]
        %v523 = vpack.c.bf16 %v516, %v516
        %s524 = scalar_lea.vmem %s4, 16
        %v525 = vld [vmem:[%s524] sm:$0xf]
        %v526 = vpack.c.bf16 %v512, %v512
        %v528 = vsel %vm414, %v525, 0
        %v531 = vsel %vm418, %v526, 0
        %533 = vmatpush.bf16.msra.mxu0 0
        %534 = vmatpush.bf16.msra.mxu0 0
        %535 = vmatpush.bf16.msra.mxu0 0
        %536 = vmatpush.bf16.msra.mxu0 0
        %537 = vmatpush.bf16.msra.mxu0 0
        %538 = vmatpush.bf16.msra.mxu0 0
        %539 = vmatpush.bf16.msra.mxu0 0
        %540 = vmatpush.bf16.msra.mxu0 %v531
        %541 = vmatmul.bf16.gmra.mxu0 %v528
        %v542 = vpop.f32.mrf.mxu0
        %v543 = vadd.f32 0.0, %v542
        %v544 = vpop.f32.mrf.mxu0
        %545 = vdwg.mxu0
        %v547 = vsel %vm414, %v522, 0
        %v550 = vsel %vm418, %v523, 0
        %552 = vmatpush.bf16.msra.mxu0 0
        %553 = vmatpush.bf16.msra.mxu0 0
        %554 = vmatpush.bf16.msra.mxu0 0
        %555 = vmatpush.bf16.msra.mxu0 0
        %556 = vmatpush.bf16.msra.mxu0 0
        %557 = vmatpush.bf16.msra.mxu0 0
        %558 = vmatpush.bf16.msra.mxu0 0
        %559 = vmatpush.bf16.msra.mxu0 %v550
        %560 = vmatmul.bf16.gmra.mxu0 %v547
        %v561 = vpop.f32.mrf.mxu0
        %v562 = vadd.f32 %v543, %v561
        %v563 = vpop.f32.mrf.mxu0
        %564 = vdwg.mxu0
        %s565 = scalar_lea.vmem %s4, 20
        %v566 = vld [vmem:[%s565] sm:$0xf]
        %v567 = vpack.c.bf16 %v520, %v520
        %v569 = vsel %vm414, %v566, 0
        %v572 = vsel %vm418, %v567, 0
        %574 = vmatpush.bf16.msra.mxu0 0
        %575 = vmatpush.bf16.msra.mxu0 0
        %576 = vmatpush.bf16.msra.mxu0 0
        %577 = vmatpush.bf16.msra.mxu0 0
        %578 = vmatpush.bf16.msra.mxu0 0
        %579 = vmatpush.bf16.msra.mxu0 0
        %580 = vmatpush.bf16.msra.mxu0 0
        %581 = vmatpush.bf16.msra.mxu0 %v572
        %582 = vmatmul.bf16.gmra.mxu0 %v569
        %v583 = vpop.f32.mrf.mxu0
        %v584 = vadd.f32 0.0, %v583
        %v585 = vpop.f32.mrf.mxu0
        %586 = vdwg.mxu0
        %v587 = vadd.f32 %v562, %v584
        %s588 = scalar_lea.vmem %s5, 8
        %v589 = vld [vmem:[%s588] sm:$0xff]
        %591 = vset.pattern.permute.xlu0 0
        %592 = vperm.xlu0 %591, %v589
        %v593 = vpop.permute.xlu0 %592
        %v595 = vadd.f32 %v587, %v593
        %v596 = vmax.f32 %v595, 0.0
        %s597 = scalar_lea.vmem %s6, 4
        %v598 = vld [vmem:[%s597] sm:$0xf]
        %v599 = vpack.c.bf16 %v596, %v596
        %s600 = scalar_lea.vmem %s7, 8
        %v601 = vld [vmem:[%s600] sm:$0xff]
        %603 = vset.pattern.permute.xlu0 0
        %604 = vperm.xlu0 %603, %v601
        %v605 = vpop.permute.xlu0 %604
        %v608 = vsel %vm414, %v598, 0
        %v611 = vsel %vm418, %v599, 0
        %613 = vmatpush.bf16.msra.mxu0 0
        %614 = vmatpush.bf16.msra.mxu0 0
        %615 = vmatpush.bf16.msra.mxu0 0
        %616 = vmatpush.bf16.msra.mxu0 0
        %617 = vmatpush.bf16.msra.mxu0 0
        %618 = vmatpush.bf16.msra.mxu0 0
        %619 = vmatpush.bf16.msra.mxu0 0
        %620 = vmatpush.bf16.msra.mxu0 %v611
        %621 = vmatmul.bf16.gmra.mxu0 %v608
        %v622 = vpop.f32.mrf.mxu0
        %v623 = vadd.f32 %v605, %v622
        %v624 = vpop.f32.mrf.mxu0
        %625 = vdwg.mxu0
        %v626 = vadd.f32 %v512, %v623
        %vm627 = vcmp.ge.s32.totalorder %v371, 4
        %628 = vrot.lane.b32.xlu0 %v626, 4
        %v629 = vpop.permute.xlu0 %628
        %v630 = vsel %vm627, %v629, 0.0
        %vm631 = vcmp.lt.s32.totalorder %v371, 12
        %632 = vrot.lane.b32.xlu0 %v626, 124
        %v633 = vpop.permute.xlu0 %632
        %v634 = vsel %vm631, %v633, 0.0
        %s635 = scalar_lea.vmem %s4, 24
        %v636 = vld [vmem:[%s635] sm:$0xf]
        %v637 = vpack.c.bf16 %v630, %v630
        %s638 = scalar_lea.vmem %s4, 28
        %v639 = vld [vmem:[%s638] sm:$0xf]
        %v640 = vpack.c.bf16 %v626, %v626
        %v642 = vsel %vm414, %v639, 0
        %v645 = vsel %vm418, %v640, 0
        %647 = vmatpush.bf16.msra.mxu0 0
        %648 = vmatpush.bf16.msra.mxu0 0
        %649 = vmatpush.bf16.msra.mxu0 0
        %650 = vmatpush.bf16.msra.mxu0 0
        %651 = vmatpush.bf16.msra.mxu0 0
        %652 = vmatpush.bf16.msra.mxu0 0
        %653 = vmatpush.bf16.msra.mxu0 0
        %654 = vmatpush.bf16.msra.mxu0 %v645
        %655 = vmatmul.bf16.gmra.mxu0 %v642
        %v656 = vpop.f32.mrf.mxu0
        %v657 = vadd.f32 0.0, %v656
        %v658 = vpop.f32.mrf.mxu0
        %659 = vdwg.mxu0
        %v661 = vsel %vm414, %v636, 0
        %v664 = vsel %vm418, %v637, 0
        %666 = vmatpush.bf16.msra.mxu0 0
        %667 = vmatpush.bf16.msra.mxu0 0
        %668 = vmatpush.bf16.msra.mxu0 0
        %669 = vmatpush.bf16.msra.mxu0 0
        %670 = vmatpush.bf16.msra.mxu0 0
        %671 = vmatpush.bf16.msra.mxu0 0
        %672 = vmatpush.bf16.msra.mxu0 0
        %673 = vmatpush.bf16.msra.mxu0 %v664
        %674 = vmatmul.bf16.gmra.mxu0 %v661
        %v675 = vpop.f32.mrf.mxu0
        %v676 = vadd.f32 %v657, %v675
        %v677 = vpop.f32.mrf.mxu0
        %678 = vdwg.mxu0
        %s679 = scalar_lea.vmem %s4, 32
        %v680 = vld [vmem:[%s679] sm:$0xf]
        %v681 = vpack.c.bf16 %v634, %v634
        %v683 = vsel %vm414, %v680, 0
        %v686 = vsel %vm418, %v681, 0
        %688 = vmatpush.bf16.msra.mxu0 0
        %689 = vmatpush.bf16.msra.mxu0 0
        %690 = vmatpush.bf16.msra.mxu0 0
        %691 = vmatpush.bf16.msra.mxu0 0
        %692 = vmatpush.bf16.msra.mxu0 0
        %693 = vmatpush.bf16.msra.mxu0 0
        %694 = vmatpush.bf16.msra.mxu0 0
        %695 = vmatpush.bf16.msra.mxu0 %v686
        %696 = vmatmul.bf16.gmra.mxu0 %v683
        %v697 = vpop.f32.mrf.mxu0
        %v698 = vadd.f32 0.0, %v697
        %v699 = vpop.f32.mrf.mxu0
        %700 = vdwg.mxu0
        %v701 = vadd.f32 %v676, %v698
        %s702 = scalar_lea.vmem %s5, 16
        %v703 = vld [vmem:[%s702] sm:$0xff]
        %705 = vset.pattern.permute.xlu0 0
        %706 = vperm.xlu0 %705, %v703
        %v707 = vpop.permute.xlu0 %706
        %v709 = vadd.f32 %v701, %v707
        %v710 = vmax.f32 %v709, 0.0
        %s711 = scalar_lea.vmem %s6, 8
        %v712 = vld [vmem:[%s711] sm:$0xf]
        %v713 = vpack.c.bf16 %v710, %v710
        %s714 = scalar_lea.vmem %s7, 16
        %v715 = vld [vmem:[%s714] sm:$0xff]
        %717 = vset.pattern.permute.xlu0 0
        %718 = vperm.xlu0 %717, %v715
        %v719 = vpop.permute.xlu0 %718
        %v722 = vsel %vm414, %v712, 0
        %v725 = vsel %vm418, %v713, 0
        %727 = vmatpush.bf16.msra.mxu0 0
        %728 = vmatpush.bf16.msra.mxu0 0
        %729 = vmatpush.bf16.msra.mxu0 0
        %730 = vmatpush.bf16.msra.mxu0 0
        %731 = vmatpush.bf16.msra.mxu0 0
        %732 = vmatpush.bf16.msra.mxu0 0
        %733 = vmatpush.bf16.msra.mxu0 0
        %734 = vmatpush.bf16.msra.mxu0 %v725
        %735 = vmatmul.bf16.gmra.mxu0 %v722
        %v736 = vpop.f32.mrf.mxu0
        %v737 = vadd.f32 %v719, %v736
        %v738 = vpop.f32.mrf.mxu0
        %739 = vdwg.mxu0
        %v740 = vadd.f32 %v626, %v737
        %v741 = vld [vmem:[%s368] sm:$0x1]
        %v742 = vld [vmem:[%s8] sm:$0x3]
        %v743 = vpack.c.bf16 %v740, %v740
        %v744 = vld [vmem:[%s9] sm:$0xf]
        %746 = vset.pattern.permute.xlu0 0
        %747 = vperm.xlu0 %746, %v744
        %v748 = vpop.permute.xlu0 %747
        %v751 = vsel %vm414, %v742, 0
        %v754 = vsel %vm418, %v743, 0
        %756 = vmatpush.bf16.msra.mxu0 0
        %757 = vmatpush.bf16.msra.mxu0 0
        %758 = vmatpush.bf16.msra.mxu0 0
        %759 = vmatpush.bf16.msra.mxu0 0
        %760 = vmatpush.bf16.msra.mxu0 0
        %761 = vmatpush.bf16.msra.mxu0 0
        %762 = vmatpush.bf16.msra.mxu0 0
        %763 = vmatpush.bf16.msra.mxu0 %v754
        %764 = vmatmul.bf16.gmra.mxu0 %v751
        %v765 = vpop.f32.mrf.mxu0
        %v766 = vadd.f32 %v748, %v765
        %v767 = vpop.f32.mrf.mxu0
        %768 = vdwg.mxu0
        %v770 = vperm.slane %v741, 0
        %v772 = vmul.f32 %v766, %v770
        %773 = vst [vmem:[%s361] sm:$0xf] %v772
        %s774 = sand.u32 %s252, 1
        %s775 = scalar_lea.sflag [#allocation3], %s774
        %s776 = sand.u32 %s252, 1
        %s777 = smul.addr %s776, 4
        %s778 = scalar_lea.vmem [#allocation2], %s777
        // Predicated region
        $region61: #{tpu_custom_call.1} parent=59 // pred_check
          %p779 = pneg %p262
        $region62: #{tpu_custom_call.1} parent=59 // pred_check_branch
          %781 = sbr.rel (%p779) target = $region64
        $region63: #{tpu_custom_call.1} parent=59 // pred_region
          %783 = vsyncadd %s775, 0
          %s784 = smul.addr %s24, 4
          %s785 = scalar_lea.hbm %s10, %s784
          %s787 = sshll.u32 %s778, 4
          %s788 = int_to_ptr.vmem [resolvable:$true] %s787
          %s789 = sshll.u32 %s785, 4
          %s790 = int_to_ptr.hbm [resolvable:$true] %s789
          %792 = dma.vmem_to_hbm [thread:$0]  %s788, 64, %s790, %s775
        $region64: #{tpu_custom_call.1} parent=59 // pred_fallthru
          _
      $region60: #{tpu_custom_call.1} parent=5 // pred_fallthru
        _
      %p793 = scmp.le.s32.totalorder 2, %s19
      // Predicated region
      $region65: #{tpu_custom_call.1} parent=5 // pred_check
        %p794 = pneg %p793
      $region66: #{tpu_custom_call.1} parent=5 // pred_check_branch
        %796 = sbr.rel (%p794) target = $region68
      $region67: #{tpu_custom_call.1} parent=5 // pred_region
        %s797 = ssub.s32 %s19, 2
        // Predicated region
        $region69: #{tpu_custom_call.1} parent=67 // pred_check
          %p798 = pneg %p268
        $region70: #{tpu_custom_call.1} parent=67 // pred_check_branch
          %800 = sbr.rel (%p798) target = $region72
        $region71: #{tpu_custom_call.1} parent=67 // pred_region
          %s801 = sand.u32 %s253, 1
          %s802 = scalar_lea.sflag [#allocation3], %s801
          %s803 = sand.u32 %s253, 1
          %s804 = smul.addr %s803, 4
          %s805 = scalar_lea.vmem [#allocation2], %s804
          %807 = dma.done %s802, 64
        $region72: #{tpu_custom_call.1} parent=67 // pred_fallthru
          _
      $region68: #{tpu_custom_call.1} parent=5 // pred_fallthru
        _
    $region6: #{tpu_custom_call.1} parent=1 // loop_footer
      %s23 = sadd.s32 1, %s19
    $region7: #{tpu_custom_call.1} parent=1 // loop_footer_branch
      %18 = sbr.rel target = $region3
    $region8: #{tpu_custom_call.1} parent=1 // loop_exit
      _
    %808 = vsyncpa [#allocation3], 1
    %s809 = scalar_lea.sflag [#allocation3], 1
    %810 = vsyncpa %s809, 1

</llo_original>
